<compile_context>
chip_gen: v5e
topology: v5e:2x2
jax: 0.10.0
libtpu: 0.0.40
codegen_flags: <defaults>
</compile_context>

<pallas_src>
import jax
import jax.numpy as jnp
import numpy as np
from jax import lax
from jax.experimental import pallas as pl
from jax.experimental.pallas import tpu as pltpu

_LANES = 128
_SUB = 8


def _round_up(x, m):
    return (x + m - 1) // m * m


# ---------------------------------------------------------------------------
# Pass 1: conv tile (MXU, f32 accumulate) -> bf16 conv tile + per-tile BN stats
# ---------------------------------------------------------------------------
def _conv_stats_kernel(p_ref, w_ref, conv_ref, stats_ref):
    # p_ref:     [Kdim, THW]   bf16 im2col patches (kh,kw,c-major rows)
    # w_ref:     [C_sub, Kdim] bf16 weight matrix (C_out padded to multiple of 8)
    # conv_ref:  [C_sub, THW]  bf16 conv output tile (lane-dense along THW)
    # stats_ref: [C_sub, 2]    f32 partial stats: lane 0 = sum, lane 1 = sum-of-squares
    acc = jnp.dot(w_ref[...], p_ref[...], preferred_element_type=jnp.float32)  # MXU
    conv_ref[...] = acc.astype(conv_ref.dtype)
    # Stats from the f32 accumulator (before the bf16 cast); two direct stores,
    # no zeros/concat temp.
    stats_ref[:, 0:1] = jnp.sum(acc, axis=1, keepdims=True)
    stats_ref[:, 1:2] = jnp.sum(acc * acc, axis=1, keepdims=True)


# ---------------------------------------------------------------------------
# Pass 2: folded BN FMA + ReLU (output is already in flat-NCHW order)
# ---------------------------------------------------------------------------
def _bn_relu_kernel(conv_ref, scale_ref, shift_ref, o_ref):
    # conv_ref:  [C_sub, THW] bf16
    # scale_ref: [C_sub, 1]   f32  (gamma * rsqrt(var+eps))
    # shift_ref: [C_sub, 1]   f32  (beta - mean * scale)
    y = conv_ref[...].astype(jnp.float32) * scale_ref[...] + shift_ref[...]
    o_ref[...] = jnp.maximum(y, 0.0).astype(o_ref.dtype)


# ---------------------------------------------------------------------------
# Host-side im2col in channel-major layout: [N, KH*KW*C, Ho*Wo]
# (plain strided slices of the zero-padded NCHW input; no NHWC transpose)
# ---------------------------------------------------------------------------
def _im2col_t(x, kh, kw, stride, padding, dilation):
    n, c, h, w = x.shape
    ho = (h + 2 * padding - dilation * (kh - 1) - 1) // stride + 1
    wo = (w + 2 * padding - dilation * (kw - 1) - 1) // stride + 1
    xp = jnp.pad(x, ((0, 0), (0, 0), (padding, padding), (padding, padding)))
    rows = []
    for i in range(kh):
        for j in range(kw):
            hi, wj = i * dilation, j * dilation
            rows.append(
                lax.slice(
                    xp,
                    (0, 0, hi, wj),
                    (n, c, hi + (ho - 1) * stride + 1, wj + (wo - 1) * stride + 1),
                    (1, 1, stride, stride),
                )
            )  # [N, C, Ho, Wo]
    pat = jnp.concatenate(rows, axis=1)  # [N, KH*KW*C, Ho, Wo]; row order (kh, kw, c)
    return pat.reshape(n, kh * kw * c, ho * wo), ho, wo


# ---------------------------------------------------------------------------
# Wrapper: BasicConv forward (conv -> BN(train batch stats) -> ReLU), NCHW out
# ---------------------------------------------------------------------------
def basic_conv_forward(x, weight, gamma, beta, *, stride=1, padding=0, dilation=1,
                       eps=1e-5, tile_hw=None, vmem_budget_bytes=16 * 1024 * 1024):
    """x: [N, C_in, H, W] f32; weight: [C_out, C_in, KH, KW]; returns NCHW f32."""
    n, c_in, h, w = x.shape
    c_out, c_in_w, kh, kw = weight.shape
    assert c_in == c_in_w, "groups=1 only"  # TODO(synk): grouped conv not implemented

    patches, ho, wo = _im2col_t(x, kh, kw, stride, padding, dilation)  # [N, Kdim, HW]
    kdim = c_in * kh * kw
    hw = ho * wo
    m = n * hw
    c_sub = _round_up(c_out, _SUB)          # channels ride the sublane axis

    # --- tile selection: largest 128-multiple THW tile fitting the VMEM budget ---
    # Double-buffered per-element footprint: patches bf16 + conv bf16 + f32 out.
    per_elem = 2 * (kdim * 2 + c_sub * 2 + c_sub * 4)
    if tile_hw is None:
        tile_hw = max(_LANES, (vmem_budget_bytes // per_elem) // _LANES * _LANES)
        tile_hw = min(tile_hw, 8192)        # keep some grid steps for megacore overlap
    tile_hw = max(_LANES, _round_up(min(tile_hw, _round_up(hw, _LANES)), _LANES))
    hw_pad = _round_up(hw, tile_hw)
    hw_tiles = hw_pad // tile_hw            # grid = (n, hw_tiles), both "parallel"

    # bf16 MXU operands (f32 accumulation in-kernel).  Zero-padded HW columns and
    # zero-padded weight rows contribute 0 to sum / sum-of-squares -> stats exact.
    patches_b = jnp.pad(patches, ((0, 0), (0, 0), (0, hw_pad - hw))).astype(jnp.bfloat16)
    w_mat = jnp.transpose(weight, (0, 2, 3, 1)).reshape(c_out, kdim).astype(jnp.float32)
    w_pad = jnp.zeros((c_sub, kdim), jnp.float32).at[:c_out].set(w_mat).astype(jnp.bfloat16)
    gamma_p = jnp.zeros((c_sub,), jnp.float32).at[:c_out].set(gamma.astype(jnp.float32))
    beta_p = jnp.zeros((c_sub,), jnp.float32).at[:c_out].set(beta.astype(jnp.float32))

    cparams = pltpu.CompilerParams(
        dimension_semantics=("parallel", "parallel"),   # shard across v7x's two TCs
        vmem_limit_bytes=48 * 1024 * 1024,              # <= v7x 64 MiB physical
    )

    # ---- pass 1: conv (MXU) -> bf16 conv tiles + per-tile partial BN stats ----
    conv_b, stats = pl.pallas_call(
        _conv_stats_kernel,
        out_shape=(
            jax.ShapeDtypeStruct((n, c_sub, hw_pad), jnp.bfloat16),
            jax.ShapeDtypeStruct((n, hw_tiles, c_sub, 2), jnp.float32),
        ),
        grid_spec=pltpu.PrefetchScalarGridSpec(
            num_scalar_prefetch=0,
            grid=(n, hw_tiles),
            in_specs=[
                pl.BlockSpec((None, kdim, tile_hw), lambda b, i: (b, 0, i)),
                pl.BlockSpec((c_sub, kdim), lambda b, i: (0, 0)),   # tiny, resident
            ],
            out_specs=(
                pl.BlockSpec((None, c_sub, tile_hw), lambda b, i: (b, 0, i)),
                pl.BlockSpec((None, None, c_sub, 2), lambda b, i: (b, i, 0, 0)),
            ),
        ),
        compiler_params=cparams,
    )(patches_b, w_pad)

    # ---- finalize BN stats (tiny per-channel math, folded scale/shift) ----
    total = jnp.sum(stats[..., 0], axis=(0, 1))       # [C_sub]
    totalsq = jnp.sum(stats[..., 1], axis=(0, 1))     # [C_sub]
    mean = total / m
    var = jnp.maximum(totalsq / m - mean * mean, 0.0)  # clamp: E[x^2]-m^2 can dip < 0
    inv = lax.rsqrt(var + eps)
    scale = (gamma_p * inv).reshape(c_sub, 1)
    shift = (beta_p - mean * gamma_p * inv).reshape(c_sub, 1)

    # ---- pass 2: normalize + ReLU (lane-dense THW stores, NCHW-flat output) ----
    out_flat = pl.pallas_call(
        _bn_relu_kernel,
        out_shape=jax.ShapeDtypeStruct((n, c_sub, hw_pad), jnp.float32),
        grid_spec=pltpu.PrefetchScalarGridSpec(
            num_scalar_prefetch=0,
            grid=(n, hw_tiles),
            in_specs=[
                pl.BlockSpec((None, c_sub, tile_hw), lambda b, i: (b, 0, i)),
                pl.BlockSpec((c_sub, 1), lambda b, i: (0, 0)),
                pl.BlockSpec((c_sub, 1), lambda b, i: (0, 0)),
            ],
            out_specs=pl.BlockSpec((None, c_sub, tile_hw), lambda b, i: (b, 0, i)),
        ),
        compiler_params=cparams,
    )(conv_b, scale, shift)

    # Output is already channel-major (flat NCHW).  When no channel/HW padding was
    # added this is a zero-copy reshape; otherwise a single slice (no transpose).
    if c_sub == c_out and hw_pad == hw:
        out = out_flat.reshape(n, c_out, ho, wo)
    else:
        out = out_flat[:, :c_out, :hw].reshape(n, c_out, ho, wo)
    return out


# ---------------------------------------------------------------------------
# Pure-JAX reference (f32 end-to-end) for a correctness sanity check
# ---------------------------------------------------------------------------
def _reference(x, weight, gamma, beta, *, stride=1, padding=1, dilation=1, eps=1e-5):
    conv = lax.conv_general_dilated(
        x, weight,
        window_strides=(stride, stride),
        padding=[(padding, padding), (padding, padding)],
        rhs_dilation=(dilation, dilation),
        dimension_numbers=("NCHW", "OIHW", "NCHW"),
    )
    mu = jnp.mean(conv, axis=(0, 2, 3), keepdims=True)
    var = jnp.mean(conv * conv, axis=(0, 2, 3), keepdims=True) - mu * mu
    y = (conv - mu) * lax.rsqrt(var + eps) * gamma.reshape(1, -1, 1, 1) + beta.reshape(1, -1, 1, 1)
    return jnp.maximum(y, 0.0)


if __name__ == "__main__":
    # BasicConv(in_planes=4, out_planes=8, kernel_size=3, stride=1, padding=1,
    #           dilation=1, groups=1, relu=True, bn=True, bias=False)
    N, C_IN, H, W = 2, 4, 16, 16
    C_OUT, KH, KW = 8, 3, 3
    STRIDE, PAD, DIL = 1, 1, 1

    key = jax.random.PRNGKey(0)
    kx, kw_, kg, kb = jax.random.split(key, 4)
    x = jax.random.normal(kx, (N, C_IN, H, W), dtype=jnp.float32)
    fan_in = C_IN * KH * KW
    weight = jax.random.normal(kw_, (C_OUT, C_IN, KH, KW), dtype=jnp.float32) / np.sqrt(fan_in)
    gamma = 0.5 + jax.random.uniform(kg, (C_OUT,), dtype=jnp.float32)   # non-trivial affine
    beta = 0.1 * jax.random.normal(kb, (C_OUT,), dtype=jnp.float32)

    # tile_hw=128 -> 2 HW tiles x 2 batches = 4 grid steps: exercises the pipeline
    # and the cross-tile BN-stat combine even at this toy size.
    out = basic_conv_forward(x, weight, gamma, beta, stride=STRIDE, padding=PAD,
                             dilation=DIL, eps=1e-5, tile_hw=128)
    out = jax.block_until_ready(out)

    ref = _reference(x, weight, gamma, beta, stride=STRIDE, padding=PAD,
                     dilation=DIL, eps=1e-5)
    # bf16 MXU operands + bf16 conv intermediate (f32 accumulate/stats) vs f32 ref.
    np.testing.assert_allclose(np.asarray(out), np.asarray(ref), rtol=5e-2, atol=5e-2)

    print("KERNEL_OK")
</pallas_src>

<mosaic_0001>
module attributes {stable_mosaic.version = 11 : i64} {
  func.func @_conv_stats_kernel(%arg0: i32, %arg1: i32, %arg2: memref<1x36x128xbf16, #tpu.memory_space<vmem>>, %arg3: memref<8x36xbf16, #tpu.memory_space<vmem>>, %arg4: memref<1x8x128xbf16, #tpu.memory_space<vmem>>, %arg5: memref<1x1x8x2xf32, #tpu.memory_space<vmem>>) attributes {dimension_semantics = [#tpu.dimension_semantics<parallel>, #tpu.dimension_semantics<parallel>], iteration_bounds = array<i64: 2, 2>, scalar_prefetch = 0 : i64, scratch_operands = 0 : i64, tpu.core_type = #tpu.core_type<tc>, window_params = [{transform_indices = @transform_0, window_bounds = array<i64: 1, 36, 128>}, {pipeline_mode = #tpu.pipeline_mode<synchronous>, transform_indices = @transform_1, window_bounds = array<i64: 8, 36>}, {transform_indices = @transform_2, window_bounds = array<i64: 1, 8, 128>}, {transform_indices = @transform_3, window_bounds = array<i64: 1, 1, 8, 2>}]} {
    %c0 = arith.constant 0 : index
    %c0_0 = arith.constant 0 : index
    %0 = vector.load %arg3[%c0, %c0_0] : memref<8x36xbf16, #tpu.memory_space<vmem>>, vector<8x36xbf16>
    %c0_1 = arith.constant 0 : index
    %c0_2 = arith.constant 0 : index
    %c0_3 = arith.constant 0 : index
    %1 = vector.load %arg2[%c0_1, %c0_2, %c0_3] : memref<1x36x128xbf16, #tpu.memory_space<vmem>>, vector<1x36x128xbf16>
    %2 = vector.shape_cast %1 : vector<1x36x128xbf16> to vector<36x128xbf16>
    %cst = arith.constant dense<0.000000e+00> : vector<8x128xf32>
    %3 = tpu.matmul %0, %2, %cst {dimension_numbers = #tpu.dot_dimension_numbers<[1], [0], [0], [1], [0, 0, 1, 1], [], []>} : vector<8x36xbf16>, vector<36x128xbf16>, vector<8x128xf32> -> vector<8x128xf32>
    %4 = arith.truncf %3 : vector<8x128xf32> to vector<8x128xbf16>
    %c0_4 = arith.constant 0 : index
    %c0_5 = arith.constant 0 : index
    %c0_6 = arith.constant 0 : index
    %5 = vector.load %arg4[%c0_4, %c0_5, %c0_6] : memref<1x8x128xbf16, #tpu.memory_space<vmem>>, vector<1x8x128xbf16>
    %6 = vector.shape_cast %5 : vector<1x8x128xbf16> to vector<8x128xbf16>
    %7 = vector.shape_cast %4 : vector<8x128xbf16> to vector<1x8x128xbf16>
    tpu.vector_store %arg4[%c0_4, %c0_5, %c0_6], %7 {strides = array<i32>} : memref<1x8x128xbf16, #tpu.memory_space<vmem>>, vector<1x8x128xbf16>,
    %cst_7 = arith.constant dense<0.000000e+00> : vector<8xf32>
    %8 = vector.multi_reduction <add>, %3, %cst_7 [1] : vector<8x128xf32> to vector<8xf32>
    %9 = vector.shape_cast %8 : vector<8xf32> to vector<8x1xf32>
    %c0_8 = arith.constant 0 : index
    %c0_9 = arith.constant 0 : index
    %c0_10 = arith.constant 0 : index
    %c0_11 = arith.constant 0 : index
    %10 = vector.load %arg5[%c0_8, %c0_9, %c0_10, %c0_11] : memref<1x1x8x2xf32, #tpu.memory_space<vmem>>, vector<1x1x8x1xf32>
    %11 = vector.shape_cast %10 : vector<1x1x8x1xf32> to vector<8x1xf32>
    %12 = vector.shape_cast %9 : vector<8x1xf32> to vector<1x1x8x1xf32>
    tpu.vector_store %arg5[%c0_8, %c0_9, %c0_10, %c0_11], %12 {strides = array<i32>} : memref<1x1x8x2xf32, #tpu.memory_space<vmem>>, vector<1x1x8x1xf32>,
    %13 = arith.mulf %3, %3 : vector<8x128xf32>
    %cst_12 = arith.constant dense<0.000000e+00> : vector<8xf32>
    %14 = vector.multi_reduction <add>, %13, %cst_12 [1] : vector<8x128xf32> to vector<8xf32>
    %15 = vector.shape_cast %14 : vector<8xf32> to vector<8x1xf32>
    %c0_13 = arith.constant 0 : index
    %c0_14 = arith.constant 0 : index
    %c0_15 = arith.constant 0 : index
    %c1 = arith.constant 1 : index
    %16 = vector.load %arg5[%c0_13, %c0_14, %c0_15, %c1] : memref<1x1x8x2xf32, #tpu.memory_space<vmem>>, vector<1x1x8x1xf32>
    %17 = vector.shape_cast %16 : vector<1x1x8x1xf32> to vector<8x1xf32>
    %18 = vector.shape_cast %15 : vector<8x1xf32> to vector<1x1x8x1xf32>
    tpu.vector_store %arg5[%c0_13, %c0_14, %c0_15, %c1], %18 {strides = array<i32>} : memref<1x1x8x2xf32, #tpu.memory_space<vmem>>, vector<1x1x8x1xf32>,
    return
  }
  func.func @transform_0(%arg0: i32, %arg1: i32) -> (i32, i32, i32) {
    %c0_i32 = arith.constant 0 : i32
    %c0_i32_0 = arith.constant 0 : i32
    return %arg0, %c0_i32, %arg1 : i32, i32, i32
  }
  func.func @transform_1(%arg0: i32, %arg1: i32) -> (i32, i32) {
    %c0_i32 = arith.constant 0 : i32
    %c0_i32_0 = arith.constant 0 : i32
    %c0_i32_1 = arith.constant 0 : i32
    return %c0_i32, %c0_i32_0 : i32, i32
  }
  func.func @transform_2(%arg0: i32, %arg1: i32) -> (i32, i32, i32) {
    %c0_i32 = arith.constant 0 : i32
    %c0_i32_0 = arith.constant 0 : i32
    return %arg0, %c0_i32, %arg1 : i32, i32, i32
  }
  func.func @transform_3(%arg0: i32, %arg1: i32) -> (i32, i32, i32, i32) {
    %c0_i32 = arith.constant 0 : i32
    %c0_i32_0 = arith.constant 0 : i32
    %c0_i32_1 = arith.constant 0 : i32
    return %arg0, %arg1, %c0_i32, %c0_i32_0 : i32, i32, i32, i32
  }
}

</mosaic_0001>

<llo_original>
// kernel: tpu_custom_call.1
$region0: #{tpu_custom_call.1}
  #allocation0 [shape = 'u32[]', space=smem, size = 0x4, offset = 0x4, fixed_abs, tag = 'smem constant byte address 0x4 - core index']
  #allocation1 [shape = 'u32[72,128]{1,0:T(1,128)}', space=vmem, size = 0x9000, scoped, tag = 'internal scratch']
  %s0 = inlined_call_operand.vmem [shape: bf16[2,36,256], index: 0, kind: input, shape index: {}]
  %s1 = inlined_call_operand.vmem [shape: bf16[8,36], index: 1, kind: input, shape index: {}]
  %s2 = inlined_call_operand.hbm [shape: bf16[2,8,256], index: 2, kind: output, shape index: {0}]
  %s3 = inlined_call_operand.vmem [shape: f32[2,2,8,2], index: 3, kind: output, shape index: {1}]
  %4 = xla_tuple %s2, %s3
  %s5 = sld [smem:[#allocation0]]
  $region90: #{tpu_custom_call.1} parent=0
    _
  %s7 = ssub.s32 1, %s5
  %s8 = scalar_select 0, %s7, %s5
  $region1: #{tpu_custom_call.1} parent=0
    #allocation2 [shape = 'u8[20480]{0}', space=vmem, size = 0x5000, scoped, tag = 'input window, operand 0']
    #allocation3 [shape = 'u8[4096]{0}', space=vmem, size = 0x1000, scoped, tag = 'output window, operand 0']
    #allocation4 [shape = 's32[2]{0}', space=sflag, size = 0x8, scoped, tag = 'scoped memory for tpu_custom_call.1']
    %9 = vsyncpa [#allocation4], 0
    %s10 = scalar_lea.sflag [#allocation4], 1
    %11 = vsyncpa %s10, 0
    loop: start=0, step=1, limit=6
    $region2: #{tpu_custom_call.1} parent=1 // loop_pre_header
      _
    $region3: #{tpu_custom_call.1} parent=1 // loop_header
      %s13 = sphi 0, %s17
      %p14 = scmp.ge.s32.totalorder %s13, 6
      %s20 = sphi 0, %s32
      %s21 = sphi 0, %s28
      %s22 = sphi 0, %s20
      %s23 = sphi 0, %s21
      %s24 = sphi 0, %s22
      %s25 = sphi 0, %s23
      %s37 = sphi 0, %s39
      %s40 = sphi 0, %s37
      %s41 = sphi 0, %s40
      %s57 = sphi 0, %s41
      %s61 = sphi 0, %s61
      %s63 = sphi 0, %s61
      %s64 = sphi 0, %s63
      %s78 = sphi 0, %s64
      %s86 = sphi 0, %s88
      %s89 = sphi 0, %s86
      %s90 = sphi 0, %s89
      %s106 = sphi 0, %s90
      %s114 = sphi 0, %s116
      %s117 = sphi 0, %s114
      %s118 = sphi 0, %s117
      %s134 = sphi 0, %s118
    $region4: #{tpu_custom_call.1} parent=1 // loop_header_branch
      %16 = sbr.rel (%p14) target = $region8
    $region5: #{tpu_custom_call.1} parent=1 // loop_body
      %s18 = ssub.s32 %s13, 1
      %s19 = ssub.s32 %s13, 2
      %s26 = sadd.s32 1, %s21
      %p27 = scmp.ge.s32.totalorder %s26, 2
      %s28 = scalar_select %p27, 0, %s26
      %s29 = sadd.s32 1, %s20
      %s30 = scalar_select %p27, %s29, %s20
      %p31 = scmp.ge.s32.totalorder %s30, 2
      %s32 = scalar_select %p31, 0, %s30
      %s33 = ssub.s32 %s20, %s32
      %s34 = ssub.s32 %s21, %s28
      %s35 = sor.u32 %s33, %s34
      %p36 = scmp.eq.s32.totalorder %s35, 0
      %s38 = sadd.s32 %s37, 1
      %s39 = scalar_select %p36, %s37, %s38
      %p42 = pneg %p36
      %p43 = scmp.eq.s32.totalorder %s13, 3
      %p44 = por %p42, %p43
      %p45 = scmp.ne.s32.totalorder %s37, %s40
      %p46 = scmp.eq.s32.totalorder %s13, 0
      %p47 = por %p45, %p46
      %p48 = scmp.ne.s32.totalorder %s37, %s40
      %p49 = scmp.eq.s32.totalorder %s18, 3
      %p50 = por %p48, %p49
      %p51 = scmp.ne.s32.totalorder %s40, %s41
      %p52 = scmp.eq.s32.totalorder %s18, 0
      %p53 = por %p51, %p52
      %p54 = scmp.ne.s32.totalorder %s40, %s41
      %p55 = scmp.eq.s32.totalorder %s19, 3
      %p56 = por %p54, %p55
      %p58 = scmp.ne.s32.totalorder %s41, %s57
      %p59 = scmp.eq.s32.totalorder %s19, 0
      %p60 = por %p58, %p59
      %s62 = sadd.s32 %s61, 1
      %p65 = scmp.eq.s32.totalorder %s13, 3
      %p66 = scmp.ne.s32.totalorder %s61, %s63
      %p67 = scmp.eq.s32.totalorder %s13, 0
      %p68 = por %p66, %p67
      %p69 = scmp.ne.s32.totalorder %s61, %s63
      %p70 = scmp.eq.s32.totalorder %s18, 3
      %p71 = por %p69, %p70
      %p72 = scmp.ne.s32.totalorder %s63, %s64
      %p73 = scmp.eq.s32.totalorder %s18, 0
      %p74 = por %p72, %p73
      %p75 = scmp.ne.s32.totalorder %s63, %s64
      %p76 = scmp.eq.s32.totalorder %s19, 3
      %p77 = por %p75, %p76
      %p79 = scmp.ne.s32.totalorder %s64, %s78
      %p80 = scmp.eq.s32.totalorder %s19, 0
      %p81 = por %p79, %p80
      %s82 = ssub.s32 %s20, %s32
      %s83 = ssub.s32 %s21, %s28
      %s84 = sor.u32 %s82, %s83
      %p85 = scmp.eq.s32.totalorder %s84, 0
      %s87 = sadd.s32 %s86, 1
      %s88 = scalar_select %p85, %s86, %s87
      %p91 = pneg %p85
      %p92 = scmp.eq.s32.totalorder %s13, 3
      %p93 = por %p91, %p92
      %p94 = scmp.ne.s32.totalorder %s86, %s89
      %p95 = scmp.eq.s32.totalorder %s13, 0
      %p96 = por %p94, %p95
      %p97 = scmp.ne.s32.totalorder %s86, %s89
      %p98 = scmp.eq.s32.totalorder %s18, 3
      %p99 = por %p97, %p98
      %p100 = scmp.ne.s32.totalorder %s89, %s90
      %p101 = scmp.eq.s32.totalorder %s18, 0
      %p102 = por %p100, %p101
      %p103 = scmp.ne.s32.totalorder %s89, %s90
      %p104 = scmp.eq.s32.totalorder %s19, 3
      %p105 = por %p103, %p104
      %p107 = scmp.ne.s32.totalorder %s90, %s106
      %p108 = scmp.eq.s32.totalorder %s19, 0
      %p109 = por %p107, %p108
      %s110 = ssub.s32 %s20, %s32
      %s111 = ssub.s32 %s21, %s28
      %s112 = sor.u32 %s110, %s111
      %p113 = scmp.eq.s32.totalorder %s112, 0
      %s115 = sadd.s32 %s114, 1
      %s116 = scalar_select %p113, %s114, %s115
      %p119 = pneg %p113
      %p120 = scmp.eq.s32.totalorder %s13, 3
      %p121 = por %p119, %p120
      %p122 = scmp.ne.s32.totalorder %s114, %s117
      %p123 = scmp.eq.s32.totalorder %s13, 0
      %p124 = por %p122, %p123
      %p125 = scmp.ne.s32.totalorder %s114, %s117
      %p126 = scmp.eq.s32.totalorder %s18, 3
      %p127 = por %p125, %p126
      %p128 = scmp.ne.s32.totalorder %s117, %s118
      %p129 = scmp.eq.s32.totalorder %s18, 0
      %p130 = por %p128, %p129
      %p131 = scmp.ne.s32.totalorder %s117, %s118
      %p132 = scmp.eq.s32.totalorder %s19, 3
      %p133 = por %p131, %p132
      %p135 = scmp.ne.s32.totalorder %s118, %s134
      %p136 = scmp.eq.s32.totalorder %s19, 0
      %p137 = por %p135, %p136
      %p138 = scmp.le.s32.totalorder 1, %s13
      %p139 = scmp.lt.s32.totalorder %s13, 5
      %p140 = pnand %p138, %p139
      %p141 = pneg %p140
      // Predicated region
      $region9: #{tpu_custom_call.1} parent=5 // pred_check
        _
      $region10: #{tpu_custom_call.1} parent=5 // pred_check_branch
        %143 = sbr.rel (%p140) target = $region12
      $region11: #{tpu_custom_call.1} parent=5 // pred_region
        %s144 = ssub.s32 %s13, 1
        // Predicated region
        $region13: #{tpu_custom_call.1} parent=11 // pred_check
          %p145 = pneg %p74
        $region14: #{tpu_custom_call.1} parent=11 // pred_check_branch
          %147 = sbr.rel (%p145) target = $region16
        $region15: #{tpu_custom_call.1} parent=11 // pred_region
          _
        $region16: #{tpu_custom_call.1} parent=11 // pred_fallthru
          _
      $region12: #{tpu_custom_call.1} parent=5 // pred_fallthru
        _
      %p148 = scmp.lt.s32.totalorder %s13, 4
      // Predicated region
      $region17: #{tpu_custom_call.1} parent=5 // pred_check
        %p149 = pneg %p148
      $region18: #{tpu_custom_call.1} parent=5 // pred_check_branch
        %151 = sbr.rel (%p149) target = $region20
      $region19: #{tpu_custom_call.1} parent=5 // pred_region
        // Predicated region
        $region21: #{tpu_custom_call.1} parent=19 // pred_check
          %p152 = pneg %p47
        $region22: #{tpu_custom_call.1} parent=19 // pred_check_branch
          %154 = sbr.rel (%p152) target = $region24
        $region23: #{tpu_custom_call.1} parent=19 // pred_region
          %s155 = sand.u32 %s37, 1
          %s156 = sand.u32 %s37, 1
          %s157 = smul.addr %s156, 20
          %s158 = scalar_lea.vmem [#allocation2], %s157
          %s159 = smul.addr %s20, 10
          %s160 = sadd.s32 %s21, %s159
          %s161 = smul.addr %s160, 4
          %s162 = scalar_lea.vmem %s0, %s161
          // Predicated region
          $region25: #{tpu_custom_call.1} parent=23 // pred_check
            _
          $region26: #{tpu_custom_call.1} parent=23 // pred_check_branch
            %164 = sbr.rel (0) target = $region28
          $region27: #{tpu_custom_call.1} parent=23 // pred_region
            // Predicated region
            $region29: #{tpu_custom_call.1} parent=27 // pred_check
              _
            $region30: #{tpu_custom_call.1} parent=27 // pred_check_branch
              %166 = sbr.rel target = $region32
            $region31: #{tpu_custom_call.1} parent=27 // pred_region
              // Predicated region
              $region44: #{tpu_custom_call.1} parent=31 // pred_check
                _
              $region45: #{tpu_custom_call.1} parent=31 // pred_check_branch
                %190 = sbr.rel (0) target = $region47
              $region46: #{tpu_custom_call.1} parent=31 // pred_region
                loop: start=0, step=1, limit=1
                $region48: #{tpu_custom_call.1} parent=46 // loop_pre_header
                  _
                $region49: #{tpu_custom_call.1} parent=46 // loop_header
                  %s192 = sphi 0, %s196
                  %p193 = scmp.ge.s32.totalorder %s192, 1
                  %s197 = sphi %s162, %s162
                  %s198 = sphi %s158, %s158
                $region50: #{tpu_custom_call.1} parent=46 // loop_header_branch
                  %195 = sbr.rel (%p193) target = $region54
                $region51: #{tpu_custom_call.1} parent=46 // loop_body
                  _
                $region52: #{tpu_custom_call.1} parent=46 // loop_footer
                  %s196 = sadd.s32 1, %s192
                $region53: #{tpu_custom_call.1} parent=46 // loop_footer_branch
                  %191 = sbr.rel target = $region49
                $region54: #{tpu_custom_call.1} parent=46 // loop_exit
                  _
                %s200 = ssub.s32 16, 1
                loop: start=0, step=1, limit=1
                $region55: #{tpu_custom_call.1} parent=46 // loop_pre_header
                  _
                $region56: #{tpu_custom_call.1} parent=46 // loop_header
                  %s202 = sphi 0, %s206
                  %p203 = scmp.ge.s32.totalorder %s202, 1
                  %s207 = sphi %s162, %s162
                  %s208 = sphi %s158, %s158
                $region57: #{tpu_custom_call.1} parent=46 // loop_header_branch
                  %205 = sbr.rel (%p203) target = $region61
                $region58: #{tpu_custom_call.1} parent=46 // loop_body
                  %v209 = vld [vmem:[%s207] sm:%s200]
                  %210 = vst [vmem:[%s208] sm:%s200] %v209
                  %v211 = vld [vmem:[%s207 + $0x8] sm:%s200]
                  %212 = vst [vmem:[%s208 + $0x4] sm:%s200] %v211
                  %v213 = vld [vmem:[%s207 + $0x10] sm:%s200]
                  %214 = vst [vmem:[%s208 + $0x8] sm:%s200] %v213
                  %v215 = vld [vmem:[%s207 + $0x18] sm:%s200]
                  %216 = vst [vmem:[%s208 + $0xc] sm:%s200] %v215
                  %v217 = vld [vmem:[%s207 + $0x20] sm:%s200]
                  %218 = vst [vmem:[%s208 + $0x10] sm:%s200] %v217
                $region59: #{tpu_custom_call.1} parent=46 // loop_footer
                  %s206 = sadd.s32 1, %s202
                $region60: #{tpu_custom_call.1} parent=46 // loop_footer_branch
                  %201 = sbr.rel target = $region56
                $region61: #{tpu_custom_call.1} parent=46 // loop_exit
                  _
              $region47: #{tpu_custom_call.1} parent=31 // pred_fallthru
                _
            $region32: #{tpu_custom_call.1} parent=27 // pred_fallthru
              _
            // Predicated region
            $region33: #{tpu_custom_call.1} parent=27 // pred_check
              _
            $region34: #{tpu_custom_call.1} parent=27 // pred_check_branch
              %168 = sbr.rel (0) target = $region36
            $region35: #{tpu_custom_call.1} parent=27 // pred_region
              %s170 = ssub.s32 16, 1
              loop: start=0, step=1, limit=1
              $region37: #{tpu_custom_call.1} parent=35 // loop_pre_header
                _
              $region38: #{tpu_custom_call.1} parent=35 // loop_header
                %s172 = sphi 0, %s176
                %p173 = scmp.ge.s32.totalorder %s172, 1
                %s177 = sphi %s162, %s162
                %s178 = sphi %s158, %s158
              $region39: #{tpu_custom_call.1} parent=35 // loop_header_branch
                %175 = sbr.rel (%p173) target = $region43
              $region40: #{tpu_custom_call.1} parent=35 // loop_body
                %v179 = vld [vmem:[%s177] sm:%s170]
                %180 = vst [vmem:[%s178] sm:%s170] %v179
                %v181 = vld [vmem:[%s177 + $0x8] sm:%s170]
                %182 = vst [vmem:[%s178 + $0x4] sm:%s170] %v181
                %v183 = vld [vmem:[%s177 + $0x10] sm:%s170]
                %184 = vst [vmem:[%s178 + $0x8] sm:%s170] %v183
                %v185 = vld [vmem:[%s177 + $0x18] sm:%s170]
                %186 = vst [vmem:[%s178 + $0xc] sm:%s170] %v185
                %v187 = vld [vmem:[%s177 + $0x20] sm:%s170]
                %188 = vst [vmem:[%s178 + $0x10] sm:%s170] %v187
              $region41: #{tpu_custom_call.1} parent=35 // loop_footer
                %s176 = sadd.s32 1, %s172
              $region42: #{tpu_custom_call.1} parent=35 // loop_footer_branch
                %171 = sbr.rel target = $region38
              $region43: #{tpu_custom_call.1} parent=35 // loop_exit
                _
            $region36: #{tpu_custom_call.1} parent=27 // pred_fallthru
              _
          $region28: #{tpu_custom_call.1} parent=23 // pred_fallthru
            _
          %219 = vnop
        $region24: #{tpu_custom_call.1} parent=19 // pred_fallthru
          _
      $region20: #{tpu_custom_call.1} parent=5 // pred_fallthru
        _
      %p220 = scmp.le.s32.totalorder 1, %s13
      %p221 = scmp.lt.s32.totalorder %s13, 5
      %p222 = pnand %p220, %p221
      %p223 = pneg %p222
      // Predicated region
      $region62: #{tpu_custom_call.1} parent=5 // pred_check
        _
      $region63: #{tpu_custom_call.1} parent=5 // pred_check_branch
        %225 = sbr.rel (%p222) target = $region65
      $region64: #{tpu_custom_call.1} parent=5 // pred_region
        %s226 = ssub.s32 %s13, 1
        %s227 = sand.u32 %s40, 1
        %s228 = sand.u32 %s40, 1
        %s229 = smul.addr %s228, 20
        %s230 = scalar_lea.vmem [#allocation2], %s229
        // Predicated region
        $region66: #{tpu_custom_call.1} parent=64 // pred_check
          %p231 = pneg %p53
        $region67: #{tpu_custom_call.1} parent=64 // pred_check_branch
          %233 = sbr.rel (%p231) target = $region69
        $region68: #{tpu_custom_call.1} parent=64 // pred_region
          _
        $region69: #{tpu_custom_call.1} parent=64 // pred_fallthru
          _
        %s234 = sand.u32 %s40, 1
        %s235 = sand.u32 %s40, 1
        %s236 = smul.addr %s235, 20
        %s237 = scalar_lea.vmem [#allocation2], %s236
        %p238 = pneg %p53
        %p239 = pneg %p50
        %p240 = pneg %p74
        %p241 = pneg %p71
        %p242 = pneg %p102
        %p243 = pneg %p99
        %s244 = sand.u32 %s89, 1
        %s245 = scalar_lea.sflag [#allocation4], %s244
        %s246 = sand.u32 %s89, 1
        %s247 = smul.addr %s246, 4
        %s248 = scalar_lea.vmem [#allocation3], %s247
        %p249 = pneg %p130
        %p250 = pneg %p127
        %p251 = scmp.lt.s32.totalorder %s22, 1
        %s252 = scalar_select %p251, %s22, 1
        %p253 = scmp.lt.s32.totalorder %s23, 1
        %s254 = scalar_select %p253, %s23, 1
        %s255 = smul.addr %s252, 2
        %s256 = sadd.s32 %s254, %s255
        %s257 = smul.addr %s256, 8
        %s258 = scalar_lea.vmem %s3, %s257
        %p259 = scmp.lt.s32.totalorder %s22, 1
        %s260 = scalar_select %p259, %s22, 1
        %p261 = scmp.lt.s32.totalorder %s23, 1
        %s262 = scalar_select %p261, %s23, 1
        %s263 = smul.addr %s260, 2
        %s264 = sadd.s32 %s262, %s263
        %s265 = smul.addr %s264, 8
        %s266 = scalar_lea.vmem %s3, %s265
        %v268 = vld [vmem:[%s1] sm:$0xf]
        %v269 = vld [vmem:[%s230] sm:$0xf]
        %v270 = vld [vmem:[%s230 + $0x4] sm:$0xf]
        %v271 = vld [vmem:[%s230 + $0x8] sm:$0xf]
        %v272 = vld [vmem:[%s230 + $0xc] sm:$0xf]
        %v273 = vld [vmem:[%s230 + $0x10] sm:$0x3]
        %v279 = vunpack.c.l.b16 %v269
        %v280 = vunpack.c.l.b16 %v270
        %v281 = vunpack.c.l.b16 %v271
        %v282 = vunpack.c.l.b16 %v272
        %v283 = vunpack.c.l.b16 %v273
        %v284 = vpack.c.b16 %v280, %v279
        %v285 = vpack.c.b16 %v282, %v281
        %v286 = vpack.c.b16 %v283, %v283
        %vm289 = vcmask 293888
        %v291 = vsel %vm289, %v268, 0
        %vm293 = vcmask 1041408
        %v295 = vsel %vm293, %v286, 0
        %297 = vmatpush.bf16.msra.mxu0 0
        %298 = vmatpush.bf16.msra.mxu0 0
        %299 = vmatpush.bf16.msra.mxu0 0
        %300 = vmatpush.bf16.msra.mxu0 0
        %301 = vmatpush.bf16.msra.mxu0 0
        %302 = vmatpush.bf16.msra.mxu0 %v295
        %303 = vmatpush.bf16.msra.mxu0 %v285
        %304 = vmatpush.bf16.msra.mxu0 %v284
        %305 = vmatmul.bf16.gmra.mxu0 %v291
        %v306 = vpop.f32.mrf.mxu0
        %v307 = vadd.f32 0.0, %v306
        %v308 = vpop.f32.mrf.mxu0
        %309 = vdwg.mxu0
        %v310 = vpack.c.bf16 %v307, %v307
        %311 = vst [vmem:[%s248] sm:$0xf] %v310
        %312 = vadd.xlane.f32.xlu0 %v307
        %v313 = vpop.xlane.xlu0 %312
        %vm314 = vcmask 7168
        %315 = vst.msk [vmem:[%s266] sm:$0xff] %vm314, %v313
        %v316 = vmul.f32 %v307, %v307
        %317 = vadd.xlane.f32.xlu0 %v316
        %v318 = vpop.xlane.xlu0 %317
        %vm319 = vcmask 15368
        %320 = vst.msk [vmem:[%s266] sm:$0xff] %vm319, %v318
        %s321 = sand.u32 %s89, 1
        %s322 = scalar_lea.sflag [#allocation4], %s321
        %s323 = sand.u32 %s89, 1
        %s324 = smul.addr %s323, 4
        %s325 = scalar_lea.vmem [#allocation3], %s324
        %p326 = scmp.lt.s32.totalorder %s22, 1
        %s327 = scalar_select %p326, %s22, 1
        %p328 = scmp.lt.s32.totalorder %s23, 1
        %s329 = scalar_select %p328, %s23, 1
        %s330 = smul.addr %s327, 2
        %s331 = sadd.s32 %s329, %s330
        %s332 = smul.addr %s331, 8
        %s333 = scalar_lea.vmem %s3, %s332
        // Predicated region
        $region70: #{tpu_custom_call.1} parent=64 // pred_check
          %p334 = pneg %p99
        $region71: #{tpu_custom_call.1} parent=64 // pred_check_branch
          %336 = sbr.rel (%p334) target = $region73
        $region72: #{tpu_custom_call.1} parent=64 // pred_region
          %338 = vsyncadd %s322, 0
          %s339 = smul.addr %s22, 2
          %s340 = sadd.s32 %s23, %s339
          %s341 = smul.addr %s340, 4
          %s342 = scalar_lea.hbm %s2, %s341
          %s344 = sshll.u32 %s325, 4
          %s345 = int_to_ptr.vmem [resolvable:$true] %s344
          %s346 = sshll.u32 %s342, 4
          %s347 = int_to_ptr.hbm [resolvable:$true] %s346
          %349 = dma.vmem_to_hbm [thread:$0]  %s345, 64, %s347, %s322
        $region73: #{tpu_custom_call.1} parent=64 // pred_fallthru
          _
        // Predicated region
        $region74: #{tpu_custom_call.1} parent=64 // pred_check
          %p350 = pneg %p127
        $region75: #{tpu_custom_call.1} parent=64 // pred_check_branch
          %352 = sbr.rel (%p350) target = $region77
        $region76: #{tpu_custom_call.1} parent=64 // pred_region
          _
        $region77: #{tpu_custom_call.1} parent=64 // pred_fallthru
          _
      $region65: #{tpu_custom_call.1} parent=5 // pred_fallthru
        _
      %p353 = scmp.le.s32.totalorder 2, %s13
      // Predicated region
      $region78: #{tpu_custom_call.1} parent=5 // pred_check
        %p354 = pneg %p353
      $region79: #{tpu_custom_call.1} parent=5 // pred_check_branch
        %356 = sbr.rel (%p354) target = $region81
      $region80: #{tpu_custom_call.1} parent=5 // pred_region
        %s357 = ssub.s32 %s13, 2
        // Predicated region
        $region82: #{tpu_custom_call.1} parent=80 // pred_check
          %p358 = pneg %p105
        $region83: #{tpu_custom_call.1} parent=80 // pred_check_branch
          %360 = sbr.rel (%p358) target = $region85
        $region84: #{tpu_custom_call.1} parent=80 // pred_region
          %s361 = sand.u32 %s90, 1
          %s362 = scalar_lea.sflag [#allocation4], %s361
          %s363 = sand.u32 %s90, 1
          %s364 = smul.addr %s363, 4
          %s365 = scalar_lea.vmem [#allocation3], %s364
          %367 = dma.done %s362, 64
        $region85: #{tpu_custom_call.1} parent=80 // pred_fallthru
          _
        // Predicated region
        $region86: #{tpu_custom_call.1} parent=80 // pred_check
          %p368 = pneg %p133
        $region87: #{tpu_custom_call.1} parent=80 // pred_check_branch
          %370 = sbr.rel (%p368) target = $region89
        $region88: #{tpu_custom_call.1} parent=80 // pred_region
          %p371 = scmp.lt.s32.totalorder %s24, 1
          %s372 = scalar_select %p371, %s24, 1
          %p373 = scmp.lt.s32.totalorder %s25, 1
          %s374 = scalar_select %p373, %s25, 1
          %s375 = smul.addr %s372, 2
          %s376 = sadd.s32 %s374, %s375
          %s377 = smul.addr %s376, 8
          %s378 = scalar_lea.vmem %s3, %s377
        $region89: #{tpu_custom_call.1} parent=80 // pred_fallthru
          _
      $region81: #{tpu_custom_call.1} parent=5 // pred_fallthru
        _
    $region6: #{tpu_custom_call.1} parent=1 // loop_footer
      %s17 = sadd.s32 1, %s13
    $region7: #{tpu_custom_call.1} parent=1 // loop_footer_branch
      %12 = sbr.rel target = $region3
    $region8: #{tpu_custom_call.1} parent=1 // loop_exit
      _
    %379 = vsyncpa [#allocation4], 1
    %s380 = scalar_lea.sflag [#allocation4], 1
    %381 = vsyncpa %s380, 1

</llo_original>
